<compile_context>
chip_gen: v5e
topology: v5e:2x2
jax: 0.10.0
libtpu: 0.0.40
codegen_flags: <defaults>
</compile_context>

<pallas_src>
import jax
import jax.numpy as jnp
from jax.experimental import pallas as pl
from jax.experimental.pallas import tpu as pltpu


def _round_up(v, m):
    return ((v + m - 1) // m) * m


def _adaptive_activation_kernel(x_ref, c_ref, o_ref):
    x = x_ref[...].astype(jnp.float32)    # (TB, TN)

    # Coefficient rows (1, TN), broadcast across sublanes by the VPU.
    #   rows = [c_relu + c_elu, c_sigmoid, c_tanh, c_elu, c_silu]
    c03 = c_ref[0:1, :]
    c1 = c_ref[1:2, :]
    c2 = c_ref[2:3, :]
    c3 = c_ref[3:4, :]
    c4 = c_ref[4:5, :]

    # Transcendentals go to the EUP slot; no exact f32 divides anywhere in the kernel.
    th = jnp.tanh(x)                       # tanh(x)
    sig = 0.5 * jnp.tanh(0.5 * x) + 0.5    # sigmoid(x) without a divide

    # elu negative branch: exp(x) - 1 for x <= 0, with a small Taylor fixup near 0^-
    # to recover expm1-level accuracy (no expm1 lowering required).
    xm = jnp.minimum(x, 0.0)
    em1 = jnp.exp(xm) - 1.0
    taylor = xm * (1.0 + xm * (0.5 + xm * (1.0 / 6.0)))
    em1 = jnp.where(xm > -0.01, taylor, em1)

    pos = x >= 0.0
    # out = c0*relu + c1*sig + c2*tanh + c3*elu + c4*silu, algebraically merged.
    out = sig * (c1 + c4 * x)
    out = out + c2 * th
    out = out + jnp.where(pos, c03 * x, c3 * em1)
    o_ref[...] = out.astype(o_ref.dtype)


def adaptive_activation(x, weights, attention_weights, *, tb_max=1024, tn_max=1024):
    """x: (B, N); weights: (N, 5); attention_weights: (N,). Returns (B, N)."""
    orig_shape = x.shape
    B, N = x.shape
    F = weights.shape[1]
    assert F == 5, "kernel is specialized for the default 5 activation functions"

    # Fold softmax(weights) and sigmoid(attention) into one per-neuron table (O(N) work),
    # pre-merging the relu+elu positive-branch coefficient (c0 + c3).
    wn = jax.nn.softmax(weights.astype(jnp.float32), axis=1)            # (N, 5)
    att = jax.nn.sigmoid(attention_weights.astype(jnp.float32))         # (N,)
    c = (wn * att[:, None]).T                                           # (5, N)
    coeff = jnp.stack([c[0] + c[3], c[1], c[2], c[3], c[4]], axis=0)    # (5, N)

    # Small-N inputs: fold k batch rows into the lane axis (free row-major reshape) so the
    # output last dim is lane-dense; tile the coefficient table k times to match.
    k = 1
    while N * k < 512 and (B % (2 * k)) == 0:
        k *= 2
    if k > 1:
        x = x.reshape(B // k, k * N)
        coeff = jnp.tile(coeff, (1, k))
    Bk, Nk = x.shape

    # Lane-dense tiles: TB multiple of 8, TN multiple of 128, up to ~4 MiB f32 each.
    TB = min(tb_max, _round_up(Bk, 8))
    TN = min(tn_max, _round_up(Nk, 128))

    # Guarantee >=2 blocks along a "parallel" axis when the data allows it, so both of
    # v7x's TensorCores get work (harmless on single-TC v5e/v6e).
    while pl.cdiv(Bk, TB) * pl.cdiv(Nk, TN) < 2:
        if TB > 8 and pl.cdiv(Bk, TB // 2) > pl.cdiv(Bk, TB):
            TB //= 2
        elif TN > 128 and pl.cdiv(Nk, TN // 2) > pl.cdiv(Nk, TN):
            TN //= 2
        else:
            break

    grid = (pl.cdiv(Bk, TB), pl.cdiv(Nk, TN))
    itemsize = jnp.dtype(x.dtype).itemsize
    tile_bytes = TB * TN * itemsize

    out = pl.pallas_call(
        _adaptive_activation_kernel,
        out_shape=jax.ShapeDtypeStruct((Bk, Nk), x.dtype),
        grid_spec=pltpu.PrefetchScalarGridSpec(
            num_scalar_prefetch=0,
            grid=grid,
            in_specs=[
                pl.BlockSpec((TB, TN), lambda i, j: (i, j)),   # x tile
                pl.BlockSpec((5, TN), lambda i, j: (0, j)),    # coeff: depends on N tile only
            ],
            out_specs=pl.BlockSpec((TB, TN), lambda i, j: (i, j)),
        ),
        compiler_params=pltpu.CompilerParams(
            dimension_semantics=("parallel", "parallel"),
            vmem_limit_bytes=min(48 * 1024 * 1024, max(32 * 1024 * 1024, 6 * tile_bytes)),
        ),
        cost_estimate=pl.CostEstimate(
            flops=20 * Bk * Nk,
            transcendentals=3 * Bk * Nk,
            bytes_accessed=2 * Bk * Nk * itemsize + 5 * Nk * 4,
        ),
    )(x, coeff)

    if k > 1:
        out = out.reshape(orig_shape)
    return out


adaptive_activation_jit = jax.jit(adaptive_activation, static_argnames=("tb_max", "tn_max"))


def adaptive_activation_ref(x, weights, attention_weights):
    """Pure-JAX reference mirroring the PyTorch forward."""
    wn = jax.nn.softmax(weights, axis=1)                 # (N, F)
    att = jax.nn.sigmoid(attention_weights)[None, :]     # (1, N)
    acts = [
        jax.nn.relu(x),
        jax.nn.sigmoid(x),
        jnp.tanh(x),
        jnp.where(x > 0, x, jnp.expm1(x)),               # F.elu (alpha=1)
        x * jax.nn.sigmoid(x),
    ]
    out = jnp.zeros_like(x)
    for i, a in enumerate(acts):
        out = out + wn[:, i][None, :] * a * att
    return out


if __name__ == "__main__":
    F = 5
    key = jax.random.PRNGKey(0)
    kx, kw, kx2, kw2, kx3, kw3, ka3 = jax.random.split(key, 7)

    # Case 1: aligned small shape (exercises the lane-dense slab path, k=4).
    B, N = 8, 128
    x = jax.random.normal(kx, (B, N), dtype=jnp.float32)
    weights = jax.random.normal(kw, (N, F), dtype=jnp.float32)
    attention_weights = jnp.ones((N,), dtype=jnp.float32)
    out = jax.block_until_ready(adaptive_activation_jit(x, weights, attention_weights))
    ref = adaptive_activation_ref(x, weights, attention_weights)
    assert out.shape == (B, N) and out.dtype == jnp.float32
    assert jnp.allclose(out, ref, atol=1e-5, rtol=1e-5), "mismatch (aligned / slab)"

    # Case 2: non-aligned shape exercises partial last blocks (no pad/slice in wrapper).
    B2, N2 = 6, 200
    x2 = jax.random.normal(kx2, (B2, N2), dtype=jnp.float32)
    weights2 = jax.random.normal(kw2, (N2, F), dtype=jnp.float32)
    attention_weights2 = jnp.ones((N2,), dtype=jnp.float32)
    out2 = jax.block_until_ready(adaptive_activation_jit(x2, weights2, attention_weights2))
    ref2 = adaptive_activation_ref(x2, weights2, attention_weights2)
    assert out2.shape == (B2, N2)
    assert jnp.allclose(out2, ref2, atol=1e-5, rtol=1e-5), "mismatch (partial blocks)"

    # Case 3: wider N (no slab), unaligned-to-tile batch split to >=2 parallel blocks.
    B3, N3 = 32, 384
    x3 = jax.random.normal(kx3, (B3, N3), dtype=jnp.float32)
    weights3 = jax.random.normal(kw3, (N3, F), dtype=jnp.float32)
    attention_weights3 = jax.random.normal(ka3, (N3,), dtype=jnp.float32)
    out3 = jax.block_until_ready(adaptive_activation_jit(x3, weights3, attention_weights3))
    ref3 = adaptive_activation_ref(x3, weights3, attention_weights3)
    assert out3.shape == (B3, N3)
    assert jnp.allclose(out3, ref3, atol=1e-5, rtol=1e-5), "mismatch (multi-block grid)"

    print("KERNEL_OK")
</pallas_src>

<mosaic_0001>
module attributes {stable_mosaic.version = 11 : i64} {
  func.func @_adaptive_activation_kernel(%arg0: i32, %arg1: i32, %arg2: memref<8x256xf32, #tpu.memory_space<vmem>>, %arg3: memref<5x256xf32, #tpu.memory_space<vmem>>, %arg4: memref<8x256xf32, #tpu.memory_space<vmem>>) attributes {dimension_semantics = [#tpu.dimension_semantics<parallel>, #tpu.dimension_semantics<parallel>], iteration_bounds = array<i64: 1, 2>, scalar_prefetch = 0 : i64, scratch_operands = 0 : i64, tpu.core_type = #tpu.core_type<tc>, window_params = [{transform_indices = @transform_0, window_bounds = array<i64: 8, 256>}, {transform_indices = @transform_1, window_bounds = array<i64: 5, 256>}, {transform_indices = @transform_2, window_bounds = array<i64: 8, 256>}]} {
    %c0 = arith.constant 0 : index
    %c0_0 = arith.constant 0 : index
    %0 = vector.load %arg2[%c0, %c0_0] : memref<8x256xf32, #tpu.memory_space<vmem>>, vector<8x256xf32>
    %c0_1 = arith.constant 0 : index
    %c0_2 = arith.constant 0 : index
    %1 = vector.load %arg3[%c0_1, %c0_2] : memref<5x256xf32, #tpu.memory_space<vmem>>, vector<1x256xf32>
    %c1 = arith.constant 1 : index
    %c0_3 = arith.constant 0 : index
    %2 = vector.load %arg3[%c1, %c0_3] : memref<5x256xf32, #tpu.memory_space<vmem>>, vector<1x256xf32>
    %c2 = arith.constant 2 : index
    %c0_4 = arith.constant 0 : index
    %3 = vector.load %arg3[%c2, %c0_4] : memref<5x256xf32, #tpu.memory_space<vmem>>, vector<1x256xf32>
    %c3 = arith.constant 3 : index
    %c0_5 = arith.constant 0 : index
    %4 = vector.load %arg3[%c3, %c0_5] : memref<5x256xf32, #tpu.memory_space<vmem>>, vector<1x256xf32>
    %c4 = arith.constant 4 : index
    %c0_6 = arith.constant 0 : index
    %5 = vector.load %arg3[%c4, %c0_6] : memref<5x256xf32, #tpu.memory_space<vmem>>, vector<1x256xf32>
    %6 = math.tanh %0 : vector<8x256xf32>
    %cst = arith.constant 5.000000e-01 : f32
    %7 = vector.broadcast %cst : f32 to vector<8x256xf32>
    %8 = arith.mulf %7, %0 : vector<8x256xf32>
    %9 = math.tanh %8 : vector<8x256xf32>
    %cst_7 = arith.constant 5.000000e-01 : f32
    %10 = vector.broadcast %cst_7 : f32 to vector<8x256xf32>
    %11 = arith.mulf %10, %9 : vector<8x256xf32>
    %cst_8 = arith.constant 5.000000e-01 : f32
    %12 = vector.broadcast %cst_8 : f32 to vector<8x256xf32>
    %13 = arith.addf %11, %12 : vector<8x256xf32>
    %cst_9 = arith.constant 0.000000e+00 : f32
    %14 = vector.broadcast %cst_9 : f32 to vector<8x256xf32>
    %15 = arith.minimumf %0, %14 : vector<8x256xf32>
    %16 = math.exp %15 : vector<8x256xf32>
    %cst_10 = arith.constant 1.000000e+00 : f32
    %17 = vector.broadcast %cst_10 : f32 to vector<8x256xf32>
    %18 = arith.subf %16, %17 : vector<8x256xf32>
    %cst_11 = arith.constant 0.166666672 : f32
    %19 = vector.broadcast %cst_11 : f32 to vector<8x256xf32>
    %20 = arith.mulf %15, %19 : vector<8x256xf32>
    %cst_12 = arith.constant 5.000000e-01 : f32
    %21 = vector.broadcast %cst_12 : f32 to vector<8x256xf32>
    %22 = arith.addf %21, %20 : vector<8x256xf32>
    %23 = arith.mulf %15, %22 : vector<8x256xf32>
    %cst_13 = arith.constant 1.000000e+00 : f32
    %24 = vector.broadcast %cst_13 : f32 to vector<8x256xf32>
    %25 = arith.addf %24, %23 : vector<8x256xf32>
    %26 = arith.mulf %15, %25 : vector<8x256xf32>
    %cst_14 = arith.constant -0.00999999977 : f32
    %27 = vector.broadcast %cst_14 : f32 to vector<8x256xf32>
    %28 = arith.cmpf ogt, %15, %27 : vector<8x256xf32>
    %29 = arith.select %28, %26, %18 : vector<8x256xi1>, vector<8x256xf32>
    %cst_15 = arith.constant 0.000000e+00 : f32
    %30 = vector.broadcast %cst_15 : f32 to vector<8x256xf32>
    %31 = arith.cmpf oge, %0, %30 : vector<8x256xf32>
    %32 = vector.broadcast %5 : vector<1x256xf32> to vector<8x256xf32>
    %33 = arith.mulf %32, %0 : vector<8x256xf32>
    %34 = vector.broadcast %2 : vector<1x256xf32> to vector<8x256xf32>
    %35 = arith.addf %34, %33 : vector<8x256xf32>
    %36 = arith.mulf %13, %35 : vector<8x256xf32>
    %37 = vector.broadcast %3 : vector<1x256xf32> to vector<8x256xf32>
    %38 = arith.mulf %37, %6 : vector<8x256xf32>
    %39 = arith.addf %36, %38 : vector<8x256xf32>
    %40 = vector.broadcast %1 : vector<1x256xf32> to vector<8x256xf32>
    %41 = arith.mulf %40, %0 : vector<8x256xf32>
    %42 = vector.broadcast %4 : vector<1x256xf32> to vector<8x256xf32>
    %43 = arith.mulf %42, %29 : vector<8x256xf32>
    %44 = arith.select %31, %41, %43 : vector<8x256xi1>, vector<8x256xf32>
    %45 = arith.addf %39, %44 : vector<8x256xf32>
    %c0_16 = arith.constant 0 : index
    %c0_17 = arith.constant 0 : index
    %46 = vector.load %arg4[%c0_16, %c0_17] : memref<8x256xf32, #tpu.memory_space<vmem>>, vector<8x256xf32>
    tpu.vector_store %arg4[%c0_16, %c0_17], %45 {strides = array<i32>} : memref<8x256xf32, #tpu.memory_space<vmem>>, vector<8x256xf32>,
    return
  }
  func.func @transform_0(%arg0: i32, %arg1: i32) -> (i32, i32) {
    %c0_i32 = arith.constant 0 : i32
    return %arg0, %arg1 : i32, i32
  }
  func.func @transform_1(%arg0: i32, %arg1: i32) -> (i32, i32) {
    %c0_i32 = arith.constant 0 : i32
    %c0_i32_0 = arith.constant 0 : i32
    return %c0_i32, %arg1 : i32, i32
  }
  func.func @transform_2(%arg0: i32, %arg1: i32) -> (i32, i32) {
    %c0_i32 = arith.constant 0 : i32
    return %arg0, %arg1 : i32, i32
  }
}

</mosaic_0001>

<llo_original>
// kernel: adaptive_activation.1
$region0: #{adaptive_activation.1}
  #allocation0 [shape = 'u32[]', space=smem, size = 0x4, offset = 0x4, fixed_abs, tag = 'smem constant byte address 0x4 - core index']
  #allocation1 [shape = 'u32[72,128]{1,0:T(1,128)}', space=vmem, size = 0x9000, scoped, tag = 'internal scratch']
  %s0 = inlined_call_operand.vmem [shape: f32[2,512], index: 0, kind: input, shape index: {}]
  %s1 = inlined_call_operand.vmem [shape: f32[5,512], index: 1, kind: input, shape index: {}]
  %s2 = inlined_call_operand.vmem [shape: f32[2,512], index: 2, kind: output, shape index: {}]
  %s3 = sld [smem:[#allocation0]]
  $region105: #{adaptive_activation.1} parent=0
    _
  %s5 = ssub.s32 1, %s3
  %s6 = scalar_select 0, %s5, %s3
  $region1: #{adaptive_activation.1} parent=0
    #allocation2 [shape = 'u8[16384]{0}', space=vmem, size = 0x4000, scoped, tag = 'input window, operand 0']
    #allocation3 [shape = 'u8[16384]{0}', space=vmem, size = 0x4000, scoped, tag = 'output window, operand 0']
    loop: start=0, step=1, limit=4
    $region2: #{adaptive_activation.1} parent=1 // loop_pre_header
      _
    $region3: #{adaptive_activation.1} parent=1 // loop_header
      %s8 = sphi 0, %s12
      %p9 = scmp.ge.s32.totalorder %s8, 4
      %s15 = sphi 0, %s27
      %s16 = sphi 0, %s23
      %s17 = sphi 0, %s15
      %s18 = sphi 0, %s16
      %s19 = sphi 0, %s17
      %s20 = sphi 0, %s18
      %s32 = sphi 0, %s34
      %s35 = sphi 0, %s32
      %s36 = sphi 0, %s35
      %s52 = sphi 0, %s36
      %s58 = sphi 0, %s60
      %s61 = sphi 0, %s58
      %s62 = sphi 0, %s61
      %s78 = sphi 0, %s62
      %s86 = sphi 0, %s88
      %s89 = sphi 0, %s86
      %s90 = sphi 0, %s89
      %s106 = sphi 0, %s90
    $region4: #{adaptive_activation.1} parent=1 // loop_header_branch
      %11 = sbr.rel (%p9) target = $region8
    $region5: #{adaptive_activation.1} parent=1 // loop_body
      %s13 = ssub.s32 %s8, 1
      %s14 = ssub.s32 %s8, 2
      %s21 = sadd.s32 1, %s16
      %p22 = scmp.ge.s32.totalorder %s21, 2
      %s23 = scalar_select %p22, 0, %s21
      %s24 = sadd.s32 1, %s15
      %s25 = scalar_select %p22, %s24, %s15
      %p26 = scmp.ge.s32.totalorder %s25, 1
      %s27 = scalar_select %p26, 0, %s25
      %s28 = ssub.s32 %s15, %s27
      %s29 = ssub.s32 %s16, %s23
      %s30 = sor.u32 %s28, %s29
      %p31 = scmp.eq.s32.totalorder %s30, 0
      %s33 = sadd.s32 %s32, 1
      %s34 = scalar_select %p31, %s32, %s33
      %p37 = pneg %p31
      %p38 = scmp.eq.s32.totalorder %s8, 1
      %p39 = por %p37, %p38
      %p40 = scmp.ne.s32.totalorder %s32, %s35
      %p41 = scmp.eq.s32.totalorder %s8, 0
      %p42 = por %p40, %p41
      %p43 = scmp.ne.s32.totalorder %s32, %s35
      %p44 = scmp.eq.s32.totalorder %s13, 1
      %p45 = por %p43, %p44
      %p46 = scmp.ne.s32.totalorder %s35, %s36
      %p47 = scmp.eq.s32.totalorder %s13, 0
      %p48 = por %p46, %p47
      %p49 = scmp.ne.s32.totalorder %s35, %s36
      %p50 = scmp.eq.s32.totalorder %s14, 1
      %p51 = por %p49, %p50
      %p53 = scmp.ne.s32.totalorder %s36, %s52
      %p54 = scmp.eq.s32.totalorder %s14, 0
      %p55 = por %p53, %p54
      %s56 = ssub.s32 %s16, %s23
      %p57 = scmp.eq.s32.totalorder %s56, 0
      %s59 = sadd.s32 %s58, 1
      %s60 = scalar_select %p57, %s58, %s59
      %p63 = pneg %p57
      %p64 = scmp.eq.s32.totalorder %s8, 1
      %p65 = por %p63, %p64
      %p66 = scmp.ne.s32.totalorder %s58, %s61
      %p67 = scmp.eq.s32.totalorder %s8, 0
      %p68 = por %p66, %p67
      %p69 = scmp.ne.s32.totalorder %s58, %s61
      %p70 = scmp.eq.s32.totalorder %s13, 1
      %p71 = por %p69, %p70
      %p72 = scmp.ne.s32.totalorder %s61, %s62
      %p73 = scmp.eq.s32.totalorder %s13, 0
      %p74 = por %p72, %p73
      %p75 = scmp.ne.s32.totalorder %s61, %s62
      %p76 = scmp.eq.s32.totalorder %s14, 1
      %p77 = por %p75, %p76
      %p79 = scmp.ne.s32.totalorder %s62, %s78
      %p80 = scmp.eq.s32.totalorder %s14, 0
      %p81 = por %p79, %p80
      %s82 = ssub.s32 %s15, %s27
      %s83 = ssub.s32 %s16, %s23
      %s84 = sor.u32 %s82, %s83
      %p85 = scmp.eq.s32.totalorder %s84, 0
      %s87 = sadd.s32 %s86, 1
      %s88 = scalar_select %p85, %s86, %s87
      %p91 = pneg %p85
      %p92 = scmp.eq.s32.totalorder %s8, 1
      %p93 = por %p91, %p92
      %p94 = scmp.ne.s32.totalorder %s86, %s89
      %p95 = scmp.eq.s32.totalorder %s8, 0
      %p96 = por %p94, %p95
      %p97 = scmp.ne.s32.totalorder %s86, %s89
      %p98 = scmp.eq.s32.totalorder %s13, 1
      %p99 = por %p97, %p98
      %p100 = scmp.ne.s32.totalorder %s89, %s90
      %p101 = scmp.eq.s32.totalorder %s13, 0
      %p102 = por %p100, %p101
      %p103 = scmp.ne.s32.totalorder %s89, %s90
      %p104 = scmp.eq.s32.totalorder %s14, 1
      %p105 = por %p103, %p104
      %p107 = scmp.ne.s32.totalorder %s90, %s106
      %p108 = scmp.eq.s32.totalorder %s14, 0
      %p109 = por %p107, %p108
      %p110 = scmp.le.s32.totalorder 1, %s8
      %p111 = scmp.lt.s32.totalorder %s8, 3
      %p112 = pnand %p110, %p111
      %p113 = pneg %p112
      // Predicated region
      $region9: #{adaptive_activation.1} parent=5 // pred_check
        _
      $region10: #{adaptive_activation.1} parent=5 // pred_check_branch
        %115 = sbr.rel (%p112) target = $region12
      $region11: #{adaptive_activation.1} parent=5 // pred_region
        %s116 = ssub.s32 %s8, 1
      $region12: #{adaptive_activation.1} parent=5 // pred_fallthru
        _
      %p117 = scmp.lt.s32.totalorder %s8, 2
      // Predicated region
      $region13: #{adaptive_activation.1} parent=5 // pred_check
        %p118 = pneg %p117
      $region14: #{adaptive_activation.1} parent=5 // pred_check_branch
        %120 = sbr.rel (%p118) target = $region16
      $region15: #{adaptive_activation.1} parent=5 // pred_region
        // Predicated region
        $region17: #{adaptive_activation.1} parent=15 // pred_check
          %p121 = pneg %p42
        $region18: #{adaptive_activation.1} parent=15 // pred_check_branch
          %123 = sbr.rel (%p121) target = $region20
        $region19: #{adaptive_activation.1} parent=15 // pred_region
          %s124 = sand.u32 %s32, 1
          %s125 = sand.u32 %s32, 1
          %s126 = smul.addr %s125, 16
          %s127 = scalar_lea.vmem [#allocation2], %s126
          %s128 = smul.u32 4, %s15
          %s129 = smul.u32 2, %s16
          %s130 = ssub.s32 1, %s128
          %s131 = smul.u32 2, %s130
          %s132 = smul.u32 %s131, 2
          %p133 = scmp.ne.s32.totalorder 0, %s132
          %s134 = smul.addr %s128, 4
          %s135 = sadd.s32 %s129, %s134
          %s136 = smul.addr %s135, 2
          %s137 = scalar_lea.vmem %s0, %s136
          // Predicated region
          $region21: #{adaptive_activation.1} parent=19 // pred_check
            %p138 = pneg %p133
          $region22: #{adaptive_activation.1} parent=19 // pred_check_branch
            %140 = sbr.rel (%p138) target = $region24
          $region23: #{adaptive_activation.1} parent=19 // pred_region
            // Predicated region
            $region25: #{adaptive_activation.1} parent=23 // pred_check
              _
            $region26: #{adaptive_activation.1} parent=23 // pred_check_branch
              %142 = sbr.rel target = $region28
            $region27: #{adaptive_activation.1} parent=23 // pred_region
              // Predicated region
              $region40: #{adaptive_activation.1} parent=27 // pred_check
                _
              $region41: #{adaptive_activation.1} parent=27 // pred_check_branch
                %166 = sbr.rel (0) target = $region43
              $region42: #{adaptive_activation.1} parent=27 // pred_region
                %s168 = ssub.s32 16, 1
                // While loop
                $region44: #{adaptive_activation.1} parent=42 // loop_pre_header
                  _
                $region45: #{adaptive_activation.1} parent=42 // loop_header
                  %s170 = sphi 0, %s172
                  %p171 = scmp.ge.s32.totalorder %s170, %s130
                  %s175 = sphi 0, %s182
                  %s176 = sphi %s137, %s185
                  %s177 = sphi %s127, %s186
                $region46: #{adaptive_activation.1} parent=42 // loop_header_branch
                  %174 = sbr.rel (%p171) target = $region50
                $region47: #{adaptive_activation.1} parent=42 // loop_body
                  %v178 = vld [vmem:[%s176] sm:%s168]
                  %179 = vst [vmem:[%s177] sm:%s168] %v178
                  %s180 = sadd.s32 1, %s175
                  %p181 = scmp.ge.s32.totalorder %s180, %s130
                  %s182 = scalar_select %p181, 0, %s180
                  %s183 = smul.u32 %s182, 8
                  %s184 = smul.u32 %s182, 4
                  %s185 = scalar_lea.vmem %s137, %s183
                  %s186 = scalar_lea.vmem %s127, %s184 [#allocation2]
                $region48: #{adaptive_activation.1} parent=42 // loop_footer
                  %s172 = sadd.s32 %s170, 1
                $region49: #{adaptive_activation.1} parent=42 // loop_footer_branch
                  %169 = sbr.rel target = $region45
                $region50: #{adaptive_activation.1} parent=42 // loop_exit
                  _
              $region43: #{adaptive_activation.1} parent=27 // pred_fallthru
                _
            $region28: #{adaptive_activation.1} parent=23 // pred_fallthru
              _
            // Predicated region
            $region29: #{adaptive_activation.1} parent=23 // pred_check
              _
            $region30: #{adaptive_activation.1} parent=23 // pred_check_branch
              %144 = sbr.rel (0) target = $region32
            $region31: #{adaptive_activation.1} parent=23 // pred_region
              %s146 = ssub.s32 16, 1
              // While loop
              $region33: #{adaptive_activation.1} parent=31 // loop_pre_header
                _
              $region34: #{adaptive_activation.1} parent=31 // loop_header
                %s148 = sphi 0, %s150
                %p149 = scmp.ge.s32.totalorder %s148, %s130
                %s153 = sphi 0, %s160
                %s154 = sphi %s137, %s163
                %s155 = sphi %s127, %s164
              $region35: #{adaptive_activation.1} parent=31 // loop_header_branch
                %152 = sbr.rel (%p149) target = $region39
              $region36: #{adaptive_activation.1} parent=31 // loop_body
                %v156 = vld [vmem:[%s154] sm:%s146]
                %157 = vst [vmem:[%s155] sm:%s146] %v156
                %s158 = sadd.s32 1, %s153
                %p159 = scmp.ge.s32.totalorder %s158, %s130
                %s160 = scalar_select %p159, 0, %s158
                %s161 = smul.u32 %s160, 8
                %s162 = smul.u32 %s160, 4
                %s163 = scalar_lea.vmem %s137, %s161
                %s164 = scalar_lea.vmem %s127, %s162 [#allocation2]
              $region37: #{adaptive_activation.1} parent=31 // loop_footer
                %s150 = sadd.s32 %s148, 1
              $region38: #{adaptive_activation.1} parent=31 // loop_footer_branch
                %147 = sbr.rel target = $region34
              $region39: #{adaptive_activation.1} parent=31 // loop_exit
                _
            $region32: #{adaptive_activation.1} parent=23 // pred_fallthru
              _
          $region24: #{adaptive_activation.1} parent=19 // pred_fallthru
            _
          %187 = vnop
        $region20: #{adaptive_activation.1} parent=15 // pred_fallthru
          _
        // Predicated region
        $region51: #{adaptive_activation.1} parent=15 // pred_check
          %p188 = pneg %p68
        $region52: #{adaptive_activation.1} parent=15 // pred_check_branch
          %190 = sbr.rel (%p188) target = $region54
        $region53: #{adaptive_activation.1} parent=15 // pred_region
          %s191 = smul.u32 2, %s16
          %p192 = scmp.lt.s32.totalorder %s191, 3
          %s193 = scalar_select %p192, %s191, 3
          %s194 = smul.addr %s193, 8
          %s195 = scalar_lea.vmem %s1, %s194
          %s196 = smul.u32 2, %s16
        $region54: #{adaptive_activation.1} parent=15 // pred_fallthru
          _
      $region16: #{adaptive_activation.1} parent=5 // pred_fallthru
        _
      %p197 = scmp.le.s32.totalorder 1, %s8
      %p198 = scmp.lt.s32.totalorder %s8, 3
      %p199 = pnand %p197, %p198
      %p200 = pneg %p199
      // Predicated region
      $region55: #{adaptive_activation.1} parent=5 // pred_check
        _
      $region56: #{adaptive_activation.1} parent=5 // pred_check_branch
        %202 = sbr.rel (%p199) target = $region58
      $region57: #{adaptive_activation.1} parent=5 // pred_region
        %s203 = ssub.s32 %s8, 1
        %s204 = sand.u32 %s35, 1
        %s205 = sand.u32 %s35, 1
        %s206 = smul.addr %s205, 16
        %s207 = scalar_lea.vmem [#allocation2], %s206
        // Predicated region
        $region59: #{adaptive_activation.1} parent=57 // pred_check
          %p208 = pneg %p48
        $region60: #{adaptive_activation.1} parent=57 // pred_check_branch
          %210 = sbr.rel (%p208) target = $region62
        $region61: #{adaptive_activation.1} parent=57 // pred_region
          _
        $region62: #{adaptive_activation.1} parent=57 // pred_fallthru
          _
        %s211 = sand.u32 %s35, 1
        %s212 = sand.u32 %s35, 1
        %s213 = smul.addr %s212, 16
        %s214 = scalar_lea.vmem [#allocation2], %s213
        %p215 = pneg %p48
        %p216 = pneg %p45
        %s217 = smul.u32 2, %s18
        %p218 = scmp.lt.s32.totalorder %s217, 3
        %s219 = scalar_select %p218, %s217, 3
        %s220 = smul.addr %s219, 8
        %s221 = scalar_lea.vmem %s1, %s220
        %p222 = pneg %p74
        %p223 = pneg %p71
        %p224 = pneg %p102
        %p225 = pneg %p99
        %s226 = sand.u32 %s89, 1
        %s227 = sand.u32 %s89, 1
        %s228 = smul.addr %s227, 16
        %s229 = scalar_lea.vmem [#allocation3], %s228
        %s230 = smul.u32 4, %s17
        %s231 = smul.u32 2, %s18
        %s232 = ssub.s32 1, %s230
        %s233 = smul.u32 2, %s232
        %s234 = smul.u32 %s233, 2
        %s235 = smul.u32 2, %s18
        %p236 = scmp.lt.s32.totalorder %s235, 3
        %s237 = scalar_select %p236, %s235, 3
        %s238 = smul.addr %s237, 8
        %s239 = scalar_lea.vmem %s1, %s238
        %s240 = smul.u32 2, %s18
        %s241 = smul.u32 4, %s17
        %s242 = smul.u32 2, %s18
        %s243 = ssub.s32 1, %s241
        %s244 = smul.u32 2, %s243
        %s245 = smul.u32 %s244, 2
        %v246 = vld [vmem:[%s207] sm:$0xf]
        %v247 = vld [vmem:[%s207 + $0x4] sm:$0xf]
        %v248 = vld [vmem:[%s207 + $0x8] sm:$0xf]
        %v249 = vld [vmem:[%s207 + $0xc] sm:$0xf]
        %v250 = vld [vmem:[%s239] ss:$8 sm:$0x3]
        %s251 = scalar_lea.vmem %s239, 1
        %v252 = vld [vmem:[%s251] ss:$8 sm:$0x3]
        %s253 = scalar_lea.vmem %s239, 2
        %v254 = vld [vmem:[%s253] ss:$8 sm:$0x3]
        %s255 = scalar_lea.vmem %s239, 3
        %v256 = vld [vmem:[%s255] ss:$8 sm:$0x3]
        %s257 = scalar_lea.vmem %s239, 4
        %v258 = vld [vmem:[%s257] ss:$8 sm:$0x3]
        %v259 = vtanh.pop %v246
        %v260 = vtanh.pop %v247
        %v261 = vtanh.pop %v248
        %v262 = vtanh.pop %v249
        %v263 = vmul.f32 %v246, 0.5
        %v264 = vmul.f32 %v247, 0.5
        %v265 = vmul.f32 %v248, 0.5
        %v266 = vmul.f32 %v249, 0.5
        %v267 = vtanh.pop %v263
        %v268 = vtanh.pop %v264
        %v269 = vtanh.pop %v265
        %v270 = vtanh.pop %v266
        %v271 = vmul.f32 %v267, 0.5
        %v272 = vmul.f32 %v268, 0.5
        %v273 = vmul.f32 %v269, 0.5
        %v274 = vmul.f32 %v270, 0.5
        %v275 = vadd.f32 %v271, 0.5
        %v276 = vadd.f32 %v272, 0.5
        %v277 = vadd.f32 %v273, 0.5
        %v278 = vadd.f32 %v274, 0.5
        %v279 = vmin.f32 %v246, 0.0
        %v280 = vmin.f32 %v247, 0.0
        %v281 = vmin.f32 %v248, 0.0
        %v282 = vmin.f32 %v249, 0.0
        %v283 = vmul.f32 %v279, 1.442695
        %v284 = vpow.pop %v283
        %v285 = vmul.f32 %v280, 1.442695
        %v286 = vpow.pop %v285
        %v287 = vmul.f32 %v281, 1.442695
        %v288 = vpow.pop %v287
        %v289 = vmul.f32 %v282, 1.442695
        %v290 = vpow.pop %v289
        %v291 = vsub.f32 %v284, 1.0
        %v292 = vsub.f32 %v286, 1.0
        %v293 = vsub.f32 %v288, 1.0
        %v294 = vsub.f32 %v290, 1.0
        %v295 = vmul.f32 %v279, 0.16666667
        %v296 = vmul.f32 %v280, 0.16666667
        %v297 = vmul.f32 %v281, 0.16666667
        %v298 = vmul.f32 %v282, 0.16666667
        %v299 = vadd.f32 %v295, 0.5
        %v300 = vadd.f32 %v296, 0.5
        %v301 = vadd.f32 %v297, 0.5
        %v302 = vadd.f32 %v298, 0.5
        %v303 = vmul.f32 %v279, %v299
        %v304 = vmul.f32 %v280, %v300
        %v305 = vmul.f32 %v281, %v301
        %v306 = vmul.f32 %v282, %v302
        %v307 = vadd.f32 %v303, 1.0
        %v308 = vadd.f32 %v304, 1.0
        %v309 = vadd.f32 %v305, 1.0
        %v310 = vadd.f32 %v306, 1.0
        %v311 = vmul.f32 %v279, %v307
        %v312 = vmul.f32 %v280, %v308
        %v313 = vmul.f32 %v281, %v309
        %v314 = vmul.f32 %v282, %v310
        %vm315 = vcmp.gt.f32.partialorder %v279, -0.01
        %vm316 = vcmp.gt.f32.partialorder %v280, -0.01
        %vm317 = vcmp.gt.f32.partialorder %v281, -0.01
        %vm318 = vcmp.gt.f32.partialorder %v282, -0.01
        %v319 = vsel %vm315, %v311, %v291
        %v320 = vsel %vm316, %v312, %v292
        %v321 = vsel %vm317, %v313, %v293
        %v322 = vsel %vm318, %v314, %v294
        %vm323 = vcmp.ge.f32.partialorder %v246, 0.0
        %vm324 = vcmp.ge.f32.partialorder %v247, 0.0
        %vm325 = vcmp.ge.f32.partialorder %v248, 0.0
        %vm326 = vcmp.ge.f32.partialorder %v249, 0.0
        %v328 = vperm.slane %v258, 0
        %v329 = vperm.slane %v258, 1
        %336 = vst [vmem:[#allocation1] ss:$4 sm:$0xff] %v246
        %s337 = scalar_lea.vmem [#allocation1], 1
        %338 = vst [vmem:[%s337] ss:$4 sm:$0xff] %v247
        %s339 = scalar_lea.vmem [#allocation1], 2
        %340 = vst [vmem:[%s339] ss:$4 sm:$0xff] %v248
        %s341 = scalar_lea.vmem [#allocation1], 3
        %342 = vst [vmem:[%s341] ss:$4 sm:$0xff] %v249
        %v343 = vld.sshfl [vmem:[#allocation1] sm:$0xff pattern:$0x73625140]
        %v344 = vld.sshfl [vmem:[#allocation1 + $0x8] sm:$0xff pattern:$0x73625140]
        %v347 = vmul.f32 %v328, %v343
        %v348 = vmul.f32 %v329, %v344
        %v350 = vperm.slane %v252, 0
        %v351 = vperm.slane %v252, 1
        %v354 = vadd.f32 %v350, %v347
        %v355 = vadd.f32 %v351, %v348
        %v358 = vrot.slane %v355, 6
        %vm359 = vcmask 1041408
        %v360 = vsel %vm359, %v354, %v358
        %vm361 = vcmask 1043458
        %v362 = vsel %vm361, %v354, %v358
        %v363 = vrot.slane %v362, 2
        %vm364 = vcmask 1045508
        %v365 = vsel %vm364, %v354, %v358
        %v366 = vrot.slane %v365, 4
        %vm367 = vcmask 1045504
        %v368 = vsel %vm367, %v358, %v354
        %v369 = vrot.slane %v368, 6
        %v374 = vmul.f32 %v275, %v360
        %v375 = vmul.f32 %v276, %v363
        %v376 = vmul.f32 %v277, %v366
        %v377 = vmul.f32 %v278, %v369
        %v379 = vperm.slane %v254, 0
        %v380 = vperm.slane %v254, 1
        %387 = vst [vmem:[#allocation1] ss:$4 sm:$0xff] %v259
        %s388 = scalar_lea.vmem [#allocation1], 1
        %389 = vst [vmem:[%s388] ss:$4 sm:$0xff] %v260
        %s390 = scalar_lea.vmem [#allocation1], 2
        %391 = vst [vmem:[%s390] ss:$4 sm:$0xff] %v261
        %s392 = scalar_lea.vmem [#allocation1], 3
        %393 = vst [vmem:[%s392] ss:$4 sm:$0xff] %v262
        %v394 = vld.sshfl [vmem:[#allocation1] sm:$0xff pattern:$0x73625140]
        %v395 = vld.sshfl [vmem:[#allocation1 + $0x8] sm:$0xff pattern:$0x73625140]
        %v398 = vmul.f32 %v379, %v394
        %v399 = vmul.f32 %v380, %v395
        %v402 = vrot.slane %v399, 6
        %v403 = vsel %vm359, %v398, %v402
        %v404 = vsel %vm361, %v398, %v402
        %v405 = vrot.slane %v404, 2
        %v406 = vsel %vm364, %v398, %v402
        %v407 = vrot.slane %v406, 4
        %v408 = vsel %vm367, %v402, %v398
        %v409 = vrot.slane %v408, 6
        %v414 = vadd.f32 %v374, %v403
        %v415 = vadd.f32 %v375, %v405
        %v416 = vadd.f32 %v376, %v407
        %v417 = vadd.f32 %v377, %v409
        %v419 = vperm.slane %v250, 0
        %v420 = vperm.slane %v250, 1
        %423 = vst [vmem:[#allocation1] ss:$4 sm:$0xff] %v246
        %s424 = scalar_lea.vmem [#allocation1], 1
        %425 = vst [vmem:[%s424] ss:$4 sm:$0xff] %v247
        %s426 = scalar_lea.vmem [#allocation1], 2
        %427 = vst [vmem:[%s426] ss:$4 sm:$0xff] %v248
        %s428 = scalar_lea.vmem [#allocation1], 3
        %429 = vst [vmem:[%s428] ss:$4 sm:$0xff] %v249
        %v430 = vld.sshfl [vmem:[#allocation1] sm:$0xff pattern:$0x73625140]
        %v431 = vld.sshfl [vmem:[#allocation1 + $0x8] sm:$0xff pattern:$0x73625140]
        %v434 = vmul.f32 %v419, %v430
        %v435 = vmul.f32 %v420, %v431
        %v437 = vperm.slane %v256, 0
        %v438 = vperm.slane %v256, 1
        %445 = vst [vmem:[#allocation1] ss:$4 sm:$0xff] %v319
        %s446 = scalar_lea.vmem [#allocation1], 1
        %447 = vst [vmem:[%s446] ss:$4 sm:$0xff] %v320
        %s448 = scalar_lea.vmem [#allocation1], 2
        %449 = vst [vmem:[%s448] ss:$4 sm:$0xff] %v321
        %s450 = scalar_lea.vmem [#allocation1], 3
        %451 = vst [vmem:[%s450] ss:$4 sm:$0xff] %v322
        %v452 = vld.sshfl [vmem:[#allocation1] sm:$0xff pattern:$0x73625140]
        %v453 = vld.sshfl [vmem:[#allocation1 + $0x8] sm:$0xff pattern:$0x73625140]
        %v456 = vmul.f32 %v437, %v452
        %v457 = vmul.f32 %v438, %v453
        %v460 = vrot.slane %v435, 6
        %v461 = vsel %vm359, %v434, %v460
        %v462 = vsel %vm361, %v434, %v460
        %v463 = vrot.slane %v462, 2
        %v464 = vsel %vm364, %v434, %v460
        %v465 = vrot.slane %v464, 4
        %v466 = vsel %vm367, %v460, %v434
        %v467 = vrot.slane %v466, 6
        %v474 = vrot.slane %v457, 6
        %v475 = vsel %vm359, %v456, %v474
        %v476 = vsel %vm361, %v456, %v474
        %v477 = vrot.slane %v476, 2
        %v478 = vsel %vm364, %v456, %v474
        %v479 = vrot.slane %v478, 4
        %v480 = vsel %vm367, %v474, %v456
        %v481 = vrot.slane %v480, 6
        %v486 = vsel %vm323, %v461, %v475
        %v487 = vsel %vm324, %v463, %v477
        %v488 = vsel %vm325, %v465, %v479
        %v489 = vsel %vm326, %v467, %v481
        %v490 = vadd.f32 %v414, %v486
        %v491 = vadd.f32 %v415, %v487
        %v492 = vadd.f32 %v416, %v488
        %v493 = vadd.f32 %v417, %v489
        %494 = vst [vmem:[%s229] sm:$0xf] %v490
        %495 = vst [vmem:[%s229 + $0x4] sm:$0xf] %v491
        %496 = vst [vmem:[%s229 + $0x8] sm:$0xf] %v492
        %497 = vst [vmem:[%s229 + $0xc] sm:$0xf] %v493
        %s498 = sand.u32 %s89, 1
        %s499 = sand.u32 %s89, 1
        %s500 = smul.addr %s499, 16
        %s501 = scalar_lea.vmem [#allocation3], %s500
        // Predicated region
        $region63: #{adaptive_activation.1} parent=57 // pred_check
          %p502 = pneg %p99
        $region64: #{adaptive_activation.1} parent=57 // pred_check_branch
          %504 = sbr.rel (%p502) target = $region66
        $region65: #{adaptive_activation.1} parent=57 // pred_region
          %s505 = smul.u32 4, %s17
          %s506 = smul.u32 2, %s18
          %s507 = ssub.s32 1, %s505
          %s508 = smul.u32 2, %s507
          %s509 = smul.u32 %s508, 2
          %p510 = scmp.ne.s32.totalorder 0, %s509
          %s511 = smul.addr %s505, 4
          %s512 = sadd.s32 %s506, %s511
          %s513 = smul.addr %s512, 2
          %s514 = scalar_lea.vmem %s2, %s513
          // Predicated region
          $region67: #{adaptive_activation.1} parent=65 // pred_check
            %p515 = pneg %p510
          $region68: #{adaptive_activation.1} parent=65 // pred_check_branch
            %517 = sbr.rel (%p515) target = $region70
          $region69: #{adaptive_activation.1} parent=65 // pred_region
            // Predicated region
            $region71: #{adaptive_activation.1} parent=69 // pred_check
              _
            $region72: #{adaptive_activation.1} parent=69 // pred_check_branch
              %519 = sbr.rel target = $region74
            $region73: #{adaptive_activation.1} parent=69 // pred_region
              // Predicated region
              $region86: #{adaptive_activation.1} parent=73 // pred_check
                _
              $region87: #{adaptive_activation.1} parent=73 // pred_check_branch
                %543 = sbr.rel (0) target = $region89
              $region88: #{adaptive_activation.1} parent=73 // pred_region
                %s545 = ssub.s32 16, 1
                // While loop
                $region90: #{adaptive_activation.1} parent=88 // loop_pre_header
                  _
                $region91: #{adaptive_activation.1} parent=88 // loop_header
                  %s547 = sphi 0, %s549
                  %p548 = scmp.ge.s32.totalorder %s547, %s507
                  %s552 = sphi 0, %s559
                  %s553 = sphi %s501, %s562
                  %s554 = sphi %s514, %s563
                $region92: #{adaptive_activation.1} parent=88 // loop_header_branch
                  %551 = sbr.rel (%p548) target = $region96
                $region93: #{adaptive_activation.1} parent=88 // loop_body
                  %v555 = vld [vmem:[%s553] sm:%s545]
                  %556 = vst [vmem:[%s554] sm:%s545] %v555
                  %s557 = sadd.s32 1, %s552
                  %p558 = scmp.ge.s32.totalorder %s557, %s507
                  %s559 = scalar_select %p558, 0, %s557
                  %s560 = smul.u32 %s559, 4
                  %s561 = smul.u32 %s559, 8
                  %s562 = scalar_lea.vmem %s501, %s560 [#allocation3]
                  %s563 = scalar_lea.vmem %s514, %s561
                $region94: #{adaptive_activation.1} parent=88 // loop_footer
                  %s549 = sadd.s32 %s547, 1
                $region95: #{adaptive_activation.1} parent=88 // loop_footer_branch
                  %546 = sbr.rel target = $region91
                $region96: #{adaptive_activation.1} parent=88 // loop_exit
                  _
              $region89: #{adaptive_activation.1} parent=73 // pred_fallthru
                _
            $region74: #{adaptive_activation.1} parent=69 // pred_fallthru
              _
            // Predicated region
            $region75: #{adaptive_activation.1} parent=69 // pred_check
              _
            $region76: #{adaptive_activation.1} parent=69 // pred_check_branch
              %521 = sbr.rel (0) target = $region78
            $region77: #{adaptive_activation.1} parent=69 // pred_region
              %s523 = ssub.s32 16, 1
              // While loop
              $region79: #{adaptive_activation.1} parent=77 // loop_pre_header
                _
              $region80: #{adaptive_activation.1} parent=77 // loop_header
                %s525 = sphi 0, %s527
                %p526 = scmp.ge.s32.totalorder %s525, %s507
                %s530 = sphi 0, %s537
                %s531 = sphi %s501, %s540
                %s532 = sphi %s514, %s541
              $region81: #{adaptive_activation.1} parent=77 // loop_header_branch
                %529 = sbr.rel (%p526) target = $region85
              $region82: #{adaptive_activation.1} parent=77 // loop_body
                %v533 = vld [vmem:[%s531] sm:%s523]
                %534 = vst [vmem:[%s532] sm:%s523] %v533
                %s535 = sadd.s32 1, %s530
                %p536 = scmp.ge.s32.totalorder %s535, %s507
                %s537 = scalar_select %p536, 0, %s535
                %s538 = smul.u32 %s537, 4
                %s539 = smul.u32 %s537, 8
                %s540 = scalar_lea.vmem %s501, %s538 [#allocation3]
                %s541 = scalar_lea.vmem %s514, %s539
              $region83: #{adaptive_activation.1} parent=77 // loop_footer
                %s527 = sadd.s32 %s525, 1
              $region84: #{adaptive_activation.1} parent=77 // loop_footer_branch
                %524 = sbr.rel target = $region80
              $region85: #{adaptive_activation.1} parent=77 // loop_exit
                _
            $region78: #{adaptive_activation.1} parent=69 // pred_fallthru
              _
          $region70: #{adaptive_activation.1} parent=65 // pred_fallthru
            _
          %564 = vnop
        $region66: #{adaptive_activation.1} parent=57 // pred_fallthru
          _
      $region58: #{adaptive_activation.1} parent=5 // pred_fallthru
        _
      %p565 = scmp.le.s32.totalorder 2, %s8
      // Predicated region
      $region97: #{adaptive_activation.1} parent=5 // pred_check
        %p566 = pneg %p565
      $region98: #{adaptive_activation.1} parent=5 // pred_check_branch
        %568 = sbr.rel (%p566) target = $region100
      $region99: #{adaptive_activation.1} parent=5 // pred_region
        %s569 = ssub.s32 %s8, 2
        // Predicated region
        $region101: #{adaptive_activation.1} parent=99 // pred_check
          %p570 = pneg %p105
        $region102: #{adaptive_activation.1} parent=99 // pred_check_branch
          %572 = sbr.rel (%p570) target = $region104
        $region103: #{adaptive_activation.1} parent=99 // pred_region
          %s573 = sand.u32 %s90, 1
          %s574 = sand.u32 %s90, 1
          %s575 = smul.addr %s574, 16
          %s576 = scalar_lea.vmem [#allocation3], %s575
        $region104: #{adaptive_activation.1} parent=99 // pred_fallthru
          _
      $region100: #{adaptive_activation.1} parent=5 // pred_fallthru
        _
    $region6: #{adaptive_activation.1} parent=1 // loop_footer
      %s12 = sadd.s32 1, %s8
    $region7: #{adaptive_activation.1} parent=1 // loop_footer_branch
      %7 = sbr.rel target = $region3
    $region8: #{adaptive_activation.1} parent=1 // loop_exit
      _

</llo_original>
